<compile_context>
chip_gen: v7x
topology: tpu7x:2x2x1
jax: 0.10.0
libtpu: 0.0.40
codegen_flags: <defaults>
</compile_context>

<pallas_src>
import functools

import numpy as np
import jax
import jax.numpy as jnp
from jax import lax
from jax.experimental import pallas as pl
from jax.experimental.pallas import tpu as pltpu

MACHINE_EPSILON = float(np.finfo(np.double).eps)
_F32_TINY = float(np.finfo(np.float32).tiny)
_VMEM_LIMIT = 32 * 1024 * 1024  # safe on v5e/v6e/v7x; tiles below are tiny anyway


# ----------------------------------------------------------------------------
# tile pickers (respect the (8, 128) BlockSpec constraint)
# ----------------------------------------------------------------------------
def _row_tile(n, pref=128):
    """Sublane-tiled axis: multiple of 8 dividing n, else the full extent."""
    if n % pref == 0:
        return pref
    for t in (256, 64, 32, 16, 8):
        if t <= n and n % t == 0:
            return t
    return n


def _col_tile(n):
    """Lane-tiled axis: multiple of 128 dividing n, else the full extent."""
    for t in (128, 256, 384, 512):
        if t <= n and n % t == 0:
            return t
    return n


# ----------------------------------------------------------------------------
# Kernel 1: tiled pairwise squared distances  d_ij = |x_i|^2 + |x_j|^2 - 2 x_i.x_j
# ----------------------------------------------------------------------------
def _pdist_kernel(a_ref, b_ref, sqa_ref, sqb_ref, out_ref):
    g = lax.dot_general(a_ref[...], b_ref[...],
                        dimension_numbers=(((1,), (1,)), ((), ())),
                        preferred_element_type=jnp.float32)      # (TM, TN) on MXU
    out_ref[...] = sqa_ref[...] + sqb_ref[...] - 2.0 * g


def pallas_pdist(x):
    n, d = x.shape
    tm, tn = _row_tile(n), _col_tile(n)
    sq = jnp.sum(x * x, axis=1)
    sq_col = sq.reshape(n, 1)
    sq_row = sq.reshape(1, n)
    return pl.pallas_call(
        _pdist_kernel,
        out_shape=jax.ShapeDtypeStruct((n, n), jnp.float32),
        grid=(n // tm, n // tn),
        in_specs=[
            pl.BlockSpec((tm, d), lambda i, j: (i, 0)),
            pl.BlockSpec((tn, d), lambda i, j: (j, 0)),
            pl.BlockSpec((tm, 1), lambda i, j: (i, 0)),
            pl.BlockSpec((1, tn), lambda i, j: (0, j)),
        ],
        out_specs=pl.BlockSpec((tm, tn), lambda i, j: (i, j)),
        compiler_params=pltpu.CompilerParams(
            dimension_semantics=("parallel", "parallel"),
            vmem_limit_bytes=_VMEM_LIMIT),
    )(x, x, sq_col, sq_row)


# ----------------------------------------------------------------------------
# Kernel 2: row-tiled conditional probabilities  p_cond = softmax(-d_knn * beta)
# ----------------------------------------------------------------------------
def _pcond_kernel(dsq_ref, beta_ref, out_ref):
    beta = beta_ref[...]                                          # (TM, 1)
    beta = jnp.where(beta == 0.0, MACHINE_EPSILON, beta)
    num = jnp.exp(-dsq_ref[...] * beta)                           # (TM, k1)
    den = jnp.maximum(jnp.sum(num, axis=1, keepdims=True), _F32_TINY)
    out_ref[...] = num / den


def pallas_pcond(dsq_knn, beta_col):
    n, k1 = dsq_knn.shape
    tm = _row_tile(n)
    return pl.pallas_call(
        _pcond_kernel,
        out_shape=jax.ShapeDtypeStruct((n, k1), jnp.float32),
        grid=(n // tm,),
        in_specs=[
            pl.BlockSpec((tm, k1), lambda i: (i, 0)),
            pl.BlockSpec((tm, 1), lambda i: (i, 0)),
        ],
        out_specs=pl.BlockSpec((tm, k1), lambda i: (i, 0)),
        compiler_params=pltpu.CompilerParams(
            dimension_semantics=("parallel",),
            vmem_limit_bytes=_VMEM_LIMIT),
    )(dsq_knn, beta_col)


# ----------------------------------------------------------------------------
# Kernel 3: tiled P/Q/KL reduction with per-row-tile scalar partials.
#   Per (TM, TN) tile:
#     scat = symmetric kNN scatter of the pre-scaled (exagg/max_P) cond. probs
#     p    = where(scat > 0, scat, eps*exaggeration)
#     dy   = student-t pairwise sq-distance of y (pure VPU, K = out_dim small)
#   Accumulated per row tile across j (into a lane-dense (8,128) output block):
#     [0,0] S_kl = sum_{offdiag} p * log(p * (1 + dy))
#     [0,1] S_p  = sum_{offdiag} p
#     [0,2] S_q  = sum_{strict upper} 1 / (1 + dy)
#   Final KL = S_kl + log(2*S_q)*S_p + N*eps*exagg*log(exagg)   (scalar epilogue)
# ----------------------------------------------------------------------------
def _tsne_tiles_kernel(ps_i_ref, nn_i_ref, ps_t_ref, nn_t_ref, y_i_ref, y_t_ref,
                       out_ref, *, tm, tn, k1, eps_exagg):
    i = pl.program_id(0)
    j = pl.program_id(1)
    r_off = i * tm
    c_off = j * tn

    row_l = lax.broadcasted_iota(jnp.int32, (tm, tn), 0)          # local row idx
    col_l = lax.broadcasted_iota(jnp.int32, (tm, tn), 1)          # local col idx

    # ---- symmetric sparse scatter, both directions built in-tile --------------
    # (k1 is a compile-time constant; static slices -> no dynamic lane indexing)
    scat = jnp.zeros((tm, tn), jnp.float32)
    for kk in range(k1):
        nn_f = nn_i_ref[:, kk:kk + 1]                             # (TM, 1) global col
        pv_f = ps_i_ref[:, kk:kk + 1]                             # (TM, 1)
        nn_b = nn_t_ref[kk:kk + 1, :]                             # (1, TN) global row
        pv_b = ps_t_ref[kk:kk + 1, :]                             # (1, TN)
        scat = (scat
                + jnp.where(col_l == nn_f - c_off, pv_f, 0.0)     # P contribution
                + jnp.where(row_l == nn_b - r_off, pv_b, 0.0))    # P^T contribution

    p = jnp.where(scat > 0.0, scat, eps_exagg)

    # ---- low-dimensional student-t term (VPU only; K = out_dim is tiny) -------
    yi = y_i_ref[...]                                             # (TM, m)
    yt = y_t_ref[...]                                             # (m, TN)
    sq_i = jnp.sum(yi * yi, axis=1, keepdims=True)                # (TM, 1)
    sq_j = jnp.sum(yt * yt, axis=0, keepdims=True)                # (1, TN)
    cross = jnp.zeros((tm, tn), jnp.float32)
    for d in range(yi.shape[1]):
        cross = cross + yi[:, d:d + 1] * yt[d:d + 1, :]
    one_plus_dy = 1.0 + (sq_i + sq_j - 2.0 * cross)
    qn = pl.reciprocal(one_plus_dy)                               # exact 1/(1+dy)

    # ---- masks from global indices --------------------------------------------
    diff = (row_l - col_l) + (r_off - c_off)                      # global row - col
    offdiag = diff != 0
    upper = diff < 0

    # ---- per-tile scalar partials ----------------------------------------------
    s_kl = jnp.sum(jnp.where(offdiag, p * jnp.log(p * one_plus_dy), 0.0))
    s_p = jnp.sum(jnp.where(offdiag, p, 0.0))
    s_q = jnp.sum(jnp.where(upper, qn, 0.0))

    r8 = lax.broadcasted_iota(jnp.int32, (8, 128), 0)
    c128 = lax.broadcasted_iota(jnp.int32, (8, 128), 1)
    partial = (jnp.where((r8 == 0) & (c128 == 0), s_kl, 0.0)
               + jnp.where((r8 == 0) & (c128 == 1), s_p, 0.0)
               + jnp.where((r8 == 0) & (c128 == 2), s_q, 0.0))

    @pl.when(j == 0)
    def _init():
        out_ref[...] = partial

    @pl.when(j > 0)
    def _acc():
        out_ref[...] = out_ref[...] + partial


def pallas_tsne_partials(ps, nn_idx, ps_t, nn_t, y, y_t, eps_exagg):
    n, k1 = ps.shape
    m = y.shape[1]
    tm, tn = _row_tile(n), _col_tile(n)
    num_i, num_j = n // tm, n // tn
    kern = functools.partial(_tsne_tiles_kernel, tm=tm, tn=tn, k1=k1,
                             eps_exagg=float(eps_exagg))
    return pl.pallas_call(
        kern,
        out_shape=jax.ShapeDtypeStruct((num_i * 8, 128), jnp.float32),
        grid=(num_i, num_j),
        in_specs=[
            pl.BlockSpec((tm, k1), lambda i, j: (i, 0)),   # pre-scaled p_cond rows
            pl.BlockSpec((tm, k1), lambda i, j: (i, 0)),   # nn indices rows
            pl.BlockSpec((k1, tn), lambda i, j: (0, j)),   # pre-scaled p_cond (T)
            pl.BlockSpec((k1, tn), lambda i, j: (0, j)),   # nn indices (T)
            pl.BlockSpec((tm, m), lambda i, j: (i, 0)),    # y rows
            pl.BlockSpec((m, tn), lambda i, j: (0, j)),    # y columns (pre-transposed)
        ],
        out_specs=pl.BlockSpec((8, 128), lambda i, j: (i, 0)),
        compiler_params=pltpu.CompilerParams(
            dimension_semantics=("parallel", "arbitrary"),
            vmem_limit_bytes=_VMEM_LIMIT),
    )(ps, nn_idx, ps_t, nn_t, y, y_t)


# ----------------------------------------------------------------------------
# TSNEWrapper equivalent
# ----------------------------------------------------------------------------
class TSNEWrapperPallas:
    def __init__(self, N, perplexity=30, early_exaggeration_fac=1):
        self.N = N
        self.perplexity = perplexity
        self.exaggeration_fac = float(early_exaggeration_fac)
        # parameter from TSNELoss.__init__: beta = zeros(N) (double -> float32 here)
        self.beta = jnp.zeros((N,), jnp.float32)

    def __call__(self, data, output):
        x, indices = data[0], data[1]
        y = output
        if indices is None:
            indices = jnp.arange(self.N, dtype=jnp.int32)
        elif len(indices) < 3 * self.perplexity + 2:
            raise ValueError(
                "Number of provided samples ({}) is too small for nearest neighbor "
                "estimation with given perplexity. Please use at least {}.".format(
                    len(indices), 3 * self.perplexity + 2))

        x = x.astype(jnp.float32)
        y = y.astype(jnp.float32)
        beta = self.beta[indices].astype(jnp.float32)
        n = x.shape[0]
        k = 3 * self.perplexity + 2
        exagg = self.exaggeration_fac

        # --- hot path 1 (Pallas, tiled): pairwise squared distances of x --------
        dist_sq = pallas_pdist(x)

        # --- kNN selection: top_k instead of a full (N,N) argsort ----------------
        # TODO(synk): fusing a running per-row top-k into the tiled pdist pass would
        # avoid the (N,N) HBM round trip entirely; done as plain-JAX glue for now.
        neg_d, order = lax.top_k(-dist_sq, k)
        dsq_knn = -neg_d[:, 1:]                       # drop self (distance ~0)
        nn_idx = order[:, 1:].astype(jnp.int32)

        # --- hot path 2 (Pallas): conditional probabilities ----------------------
        p_cond = pallas_pcond(dsq_knn, beta.reshape(n, 1))

        # Global normalizer of the symmetrized sparse P: sum of sparse values
        # = 2 * sum(p_cond)  (analytically 2N; computed exactly for fidelity).
        max_p = jnp.maximum(2.0 * jnp.sum(p_cond), jnp.float32(MACHINE_EPSILON))
        # Bake exaggeration and 1/max_P into the scatter values so the tiled
        # scatter in kernel 3 directly produces P*exaggeration.
        ps = p_cond * (jnp.float32(exagg) / max_p)
        ps_t = ps.T                                  # tiny (k1, N) transposes in glue
        nn_t = nn_idx.T
        y_t = y.T

        # --- hot path 3 (Pallas, single pass): P/Q/KL tiled reduction -------------
        # The eps floor in the kernel must be eps*exaggeration (reference floors P
        # first, then multiplies by the exaggeration factor) -> compile-time const.
        out = pallas_tsne_partials(ps, nn_idx, ps_t, nn_t, y, y_t,
                                   MACHINE_EPSILON * exagg)
        totals = jnp.sum(out, axis=0)                # (128,)
        s_kl, s_p, s_q = totals[0], totals[1], totals[2]

        # scalar epilogue: fold in the global Q normalizer and the diagonal term
        #   diag:  P_ii = eps*exagg, Q_ii = eps  ->  eps*exagg*log(exagg) per row
        qden = 2.0 * s_q
        diag_term = n * MACHINE_EPSILON * exagg * float(np.log(exagg))
        return s_kl + jnp.log(qden) * s_p + diag_term


# ----------------------------------------------------------------------------
# Pure-JAX reference (mirrors the PyTorch math, float32)
# ----------------------------------------------------------------------------
def reference_loss(x, y, beta, perplexity, exaggeration):
    eps = MACHINE_EPSILON
    hp = lax.Precision.HIGHEST
    x = x.astype(jnp.float32)
    y = y.astype(jnp.float32)
    beta = jnp.where(beta == 0.0, eps, beta.astype(jnp.float32))

    def pdist(v):
        g = jnp.matmul(v, v.T, precision=hp)
        sq = jnp.sum(v * v, axis=1)
        return -2.0 * g + sq[None, :] + sq[:, None]

    n = x.shape[0]
    k = 3 * perplexity + 2
    d = pdist(x)
    order = jnp.argsort(d, axis=1)
    ds = jnp.take_along_axis(d, order, axis=1)[:, 1:k]
    nn = order[:, 1:k]
    num = jnp.exp(-ds * beta[:, None])
    P = num / jnp.sum(num, axis=1, keepdims=True)
    Pd = jnp.zeros((n, n), jnp.float32).at[jnp.arange(n)[:, None], nn].add(P)
    Ps = Pd + Pd.T
    Ps = Ps / jnp.maximum(jnp.sum(Ps), eps)
    Ps = jnp.where(Ps > 0, Ps, eps) * exaggeration

    dy = pdist(y)
    numq = 1.0 / (1.0 + dy)
    upper = jnp.triu(jnp.ones((n, n), bool), k=1)
    Q = numq / (2.0 * jnp.sum(jnp.where(upper, numq, 0.0)))
    Q = jnp.where(jnp.eye(n, dtype=bool), 0.0, Q)
    Q = jnp.where(Q > 0, Q, eps)
    return jnp.sum(Ps * jnp.log(jnp.where(Ps > 0, Ps, eps) / Q))


if __name__ == "__main__":
    key = jax.random.PRNGKey(0)
    N, D, OUT = 256, 32, 2
    perplexity = 10                      # 3*perplexity+2 = 32 <= N

    kx, ky, kb = jax.random.split(key, 3)
    x = jax.random.normal(kx, (N, D), jnp.float32)           # high-dim data
    y = 0.1 * jax.random.normal(ky, (N, OUT), jnp.float32)   # low-dim embedding
    indices = jnp.arange(N, dtype=jnp.int32)

    model = TSNEWrapperPallas(N, perplexity=perplexity, early_exaggeration_fac=1.0)
    # Deterministic stand-in for the faiss-based _compute_beta precision search
    # (not part of forward(); module default is zeros -> epsilon).
    model.beta = 0.05 + 0.1 * jax.random.uniform(kb, (N,), jnp.float32)

    loss = model((x, indices), y)
    loss = jax.block_until_ready(loss)

    ref = reference_loss(x, y, model.beta[indices], perplexity,
                         model.exaggeration_fac)
    assert bool(jnp.isfinite(loss))
    np.testing.assert_allclose(np.array(loss), np.array(ref), rtol=2e-2, atol=1e-4)
    print("KERNEL_OK")
</pallas_src>

<mosaic_0001>
module attributes {stable_mosaic.version = 11 : i64} {
  func.func @_pdist_kernel(%arg0: i32, %arg1: i32, %arg2: memref<128x32xf32, #tpu.memory_space<vmem>>, %arg3: memref<128x32xf32, #tpu.memory_space<vmem>>, %arg4: memref<128x1xf32, #tpu.memory_space<vmem>>, %arg5: memref<1x128xf32, #tpu.memory_space<vmem>>, %arg6: memref<128x128xf32, #tpu.memory_space<vmem>>) attributes {dimension_semantics = [#tpu.dimension_semantics<parallel>, #tpu.dimension_semantics<parallel>], iteration_bounds = array<i64: 2, 2>, scalar_prefetch = 0 : i64, scratch_operands = 0 : i64, tpu.core_type = #tpu.core_type<tc>, window_params = [{transform_indices = @transform_0, window_bounds = array<i64: 128, 32>}, {transform_indices = @transform_1, window_bounds = array<i64: 128, 32>}, {transform_indices = @transform_2, window_bounds = array<i64: 128, 1>}, {transform_indices = @transform_3, window_bounds = array<i64: 1, 128>}, {transform_indices = @transform_4, window_bounds = array<i64: 128, 128>}]} {
    %c0 = arith.constant 0 : index
    %c0_0 = arith.constant 0 : index
    %0 = vector.load %arg2[%c0, %c0_0] : memref<128x32xf32, #tpu.memory_space<vmem>>, vector<128x32xf32>
    %c0_1 = arith.constant 0 : index
    %c0_2 = arith.constant 0 : index
    %1 = vector.load %arg3[%c0_1, %c0_2] : memref<128x32xf32, #tpu.memory_space<vmem>>, vector<128x32xf32>
    %cst = arith.constant dense<0.000000e+00> : vector<128x128xf32>
    %2 = tpu.matmul %0, %1, %cst {dimension_numbers = #tpu.dot_dimension_numbers<[1], [1], [0], [0], [0, 0, 1, 0], [], []>} : vector<128x32xf32>, vector<128x32xf32>, vector<128x128xf32> -> vector<128x128xf32>
    %c0_3 = arith.constant 0 : index
    %c0_4 = arith.constant 0 : index
    %3 = vector.load %arg4[%c0_3, %c0_4] : memref<128x1xf32, #tpu.memory_space<vmem>>, vector<128x1xf32>
    %c0_5 = arith.constant 0 : index
    %c0_6 = arith.constant 0 : index
    %4 = vector.load %arg5[%c0_5, %c0_6] : memref<1x128xf32, #tpu.memory_space<vmem>>, vector<1x128xf32>
    %5 = vector.broadcast %3 : vector<128x1xf32> to vector<128x128xf32>
    %6 = vector.broadcast %4 : vector<1x128xf32> to vector<128x128xf32>
    %7 = arith.addf %5, %6 : vector<128x128xf32>
    %cst_7 = arith.constant 2.000000e+00 : f32
    %8 = vector.broadcast %cst_7 : f32 to vector<128x128xf32>
    %9 = arith.mulf %8, %2 : vector<128x128xf32>
    %10 = arith.subf %7, %9 : vector<128x128xf32>
    %c0_8 = arith.constant 0 : index
    %c0_9 = arith.constant 0 : index
    %11 = vector.load %arg6[%c0_8, %c0_9] : memref<128x128xf32, #tpu.memory_space<vmem>>, vector<128x128xf32>
    tpu.vector_store %arg6[%c0_8, %c0_9], %10 {strides = array<i32>} : memref<128x128xf32, #tpu.memory_space<vmem>>, vector<128x128xf32>,
    return
  }
  func.func @transform_0(%arg0: i32, %arg1: i32) -> (i32, i32) {
    %c0_i32 = arith.constant 0 : i32
    %c0_i32_0 = arith.constant 0 : i32
    return %arg0, %c0_i32 : i32, i32
  }
  func.func @transform_1(%arg0: i32, %arg1: i32) -> (i32, i32) {
    %c0_i32 = arith.constant 0 : i32
    %c0_i32_0 = arith.constant 0 : i32
    return %arg1, %c0_i32 : i32, i32
  }
  func.func @transform_2(%arg0: i32, %arg1: i32) -> (i32, i32) {
    %c0_i32 = arith.constant 0 : i32
    %c0_i32_0 = arith.constant 0 : i32
    return %arg0, %c0_i32 : i32, i32
  }
  func.func @transform_3(%arg0: i32, %arg1: i32) -> (i32, i32) {
    %c0_i32 = arith.constant 0 : i32
    %c0_i32_0 = arith.constant 0 : i32
    return %c0_i32, %arg1 : i32, i32
  }
  func.func @transform_4(%arg0: i32, %arg1: i32) -> (i32, i32) {
    %c0_i32 = arith.constant 0 : i32
    return %arg0, %arg1 : i32, i32
  }
}

</mosaic_0001>

<llo_original>
// kernel: tpu_custom_call.1
$region0: #{tpu_custom_call.1}
  #allocation0 [shape = 'u32[]', space=smem, size = 0x4, offset = 0x4, fixed_abs, tag = 'smem constant byte address 0x4 - core index']
  #allocation1 [shape = 'u32[144,128]{1,0:T(1,128)}', space=vmem, size = 0x12000, scoped, tag = 'internal scratch']
  %s0 = inlined_call_operand.vmem [shape: f32[256,32], index: 0, kind: input, shape index: {}]
  %s1 = inlined_call_operand.vmem [shape: f32[256,32], index: 1, kind: input, shape index: {}]
  %s2 = inlined_call_operand.vmem [shape: f32[256,1], index: 2, kind: input, shape index: {}]
  %s3 = inlined_call_operand.vmem [shape: f32[1,256], index: 3, kind: input, shape index: {}]
  %s4 = inlined_call_operand.hbm [shape: f32[256,256], index: 4, kind: output, shape index: {}]
  %s5 = sld [smem:[#allocation0]]
  $region49: #{tpu_custom_call.1} parent=0
    _
  %s7 = ssub.s32 1, %s5
  %s8 = scalar_select 0, %s7, %s5
  $region1: #{tpu_custom_call.1} parent=0
    #allocation2 [shape = 'u8[131072]{0}', space=vmem, size = 0x20000, scoped, tag = 'output window, operand 0']
    #allocation3 [shape = 's32[2]{0}', space=sflag, size = 0x8, scoped, tag = 'scoped memory for tpu_custom_call.1']
    %9 = vsyncpa [#allocation3], 0
    %s10 = scalar_lea.sflag [#allocation3], 1
    %11 = vsyncpa %s10, 0
    loop: start=0, step=1, limit=6
    $region2: #{tpu_custom_call.1} parent=1 // loop_pre_header
      _
    $region3: #{tpu_custom_call.1} parent=1 // loop_header
      %s13 = sphi 0, %s17
      %p14 = scmp.ge.s32.totalorder %s13, 6
      %s20 = sphi 0, %s32
      %s21 = sphi 0, %s28
      %s22 = sphi 0, %s20
      %s23 = sphi 0, %s21
      %s24 = sphi 0, %s22
      %s25 = sphi 0, %s23
      %s35 = sphi 0, %s37
      %s38 = sphi 0, %s35
      %s39 = sphi 0, %s38
      %s55 = sphi 0, %s39
      %s61 = sphi 0, %s63
      %s64 = sphi 0, %s61
      %s65 = sphi 0, %s64
      %s81 = sphi 0, %s65
      %s87 = sphi 0, %s89
      %s90 = sphi 0, %s87
      %s91 = sphi 0, %s90
      %s107 = sphi 0, %s91
      %s113 = sphi 0, %s115
      %s116 = sphi 0, %s113
      %s117 = sphi 0, %s116
      %s133 = sphi 0, %s117
      %s141 = sphi 0, %s143
      %s144 = sphi 0, %s141
      %s145 = sphi 0, %s144
      %s161 = sphi 0, %s145
    $region4: #{tpu_custom_call.1} parent=1 // loop_header_branch
      %16 = sbr.rel (%p14) target = $region8
    $region5: #{tpu_custom_call.1} parent=1 // loop_body
      %s18 = ssub.s32 %s13, 1
      %s19 = ssub.s32 %s13, 2
      %s26 = sadd.s32 1, %s21
      %p27 = scmp.ge.s32.totalorder %s26, 2
      %s28 = scalar_select %p27, 0, %s26
      %s29 = sadd.s32 1, %s20
      %s30 = scalar_select %p27, %s29, %s20
      %p31 = scmp.ge.s32.totalorder %s30, 2
      %s32 = scalar_select %p31, 0, %s30
      %s33 = ssub.s32 %s20, %s32
      %p34 = scmp.eq.s32.totalorder %s33, 0
      %s36 = sadd.s32 %s35, 1
      %s37 = scalar_select %p34, %s35, %s36
      %p40 = pneg %p34
      %p41 = scmp.eq.s32.totalorder %s13, 3
      %p42 = por %p40, %p41
      %p43 = scmp.ne.s32.totalorder %s35, %s38
      %p44 = scmp.eq.s32.totalorder %s13, 0
      %p45 = por %p43, %p44
      %p46 = scmp.ne.s32.totalorder %s35, %s38
      %p47 = scmp.eq.s32.totalorder %s18, 3
      %p48 = por %p46, %p47
      %p49 = scmp.ne.s32.totalorder %s38, %s39
      %p50 = scmp.eq.s32.totalorder %s18, 0
      %p51 = por %p49, %p50
      %p52 = scmp.ne.s32.totalorder %s38, %s39
      %p53 = scmp.eq.s32.totalorder %s19, 3
      %p54 = por %p52, %p53
      %p56 = scmp.ne.s32.totalorder %s39, %s55
      %p57 = scmp.eq.s32.totalorder %s19, 0
      %p58 = por %p56, %p57
      %s59 = ssub.s32 %s21, %s28
      %p60 = scmp.eq.s32.totalorder %s59, 0
      %s62 = sadd.s32 %s61, 1
      %s63 = scalar_select %p60, %s61, %s62
      %p66 = pneg %p60
      %p67 = scmp.eq.s32.totalorder %s13, 3
      %p68 = por %p66, %p67
      %p69 = scmp.ne.s32.totalorder %s61, %s64
      %p70 = scmp.eq.s32.totalorder %s13, 0
      %p71 = por %p69, %p70
      %p72 = scmp.ne.s32.totalorder %s61, %s64
      %p73 = scmp.eq.s32.totalorder %s18, 3
      %p74 = por %p72, %p73
      %p75 = scmp.ne.s32.totalorder %s64, %s65
      %p76 = scmp.eq.s32.totalorder %s18, 0
      %p77 = por %p75, %p76
      %p78 = scmp.ne.s32.totalorder %s64, %s65
      %p79 = scmp.eq.s32.totalorder %s19, 3
      %p80 = por %p78, %p79
      %p82 = scmp.ne.s32.totalorder %s65, %s81
      %p83 = scmp.eq.s32.totalorder %s19, 0
      %p84 = por %p82, %p83
      %s85 = ssub.s32 %s20, %s32
      %p86 = scmp.eq.s32.totalorder %s85, 0
      %s88 = sadd.s32 %s87, 1
      %s89 = scalar_select %p86, %s87, %s88
      %p92 = pneg %p86
      %p93 = scmp.eq.s32.totalorder %s13, 3
      %p94 = por %p92, %p93
      %p95 = scmp.ne.s32.totalorder %s87, %s90
      %p96 = scmp.eq.s32.totalorder %s13, 0
      %p97 = por %p95, %p96
      %p98 = scmp.ne.s32.totalorder %s87, %s90
      %p99 = scmp.eq.s32.totalorder %s18, 3
      %p100 = por %p98, %p99
      %p101 = scmp.ne.s32.totalorder %s90, %s91
      %p102 = scmp.eq.s32.totalorder %s18, 0
      %p103 = por %p101, %p102
      %p104 = scmp.ne.s32.totalorder %s90, %s91
      %p105 = scmp.eq.s32.totalorder %s19, 3
      %p106 = por %p104, %p105
      %p108 = scmp.ne.s32.totalorder %s91, %s107
      %p109 = scmp.eq.s32.totalorder %s19, 0
      %p110 = por %p108, %p109
      %s111 = ssub.s32 %s21, %s28
      %p112 = scmp.eq.s32.totalorder %s111, 0
      %s114 = sadd.s32 %s113, 1
      %s115 = scalar_select %p112, %s113, %s114
      %p118 = pneg %p112
      %p119 = scmp.eq.s32.totalorder %s13, 3
      %p120 = por %p118, %p119
      %p121 = scmp.ne.s32.totalorder %s113, %s116
      %p122 = scmp.eq.s32.totalorder %s13, 0
      %p123 = por %p121, %p122
      %p124 = scmp.ne.s32.totalorder %s113, %s116
      %p125 = scmp.eq.s32.totalorder %s18, 3
      %p126 = por %p124, %p125
      %p127 = scmp.ne.s32.totalorder %s116, %s117
      %p128 = scmp.eq.s32.totalorder %s18, 0
      %p129 = por %p127, %p128
      %p130 = scmp.ne.s32.totalorder %s116, %s117
      %p131 = scmp.eq.s32.totalorder %s19, 3
      %p132 = por %p130, %p131
      %p134 = scmp.ne.s32.totalorder %s117, %s133
      %p135 = scmp.eq.s32.totalorder %s19, 0
      %p136 = por %p134, %p135
      %s137 = ssub.s32 %s20, %s32
      %s138 = ssub.s32 %s21, %s28
      %s139 = sor.u32 %s137, %s138
      %p140 = scmp.eq.s32.totalorder %s139, 0
      %s142 = sadd.s32 %s141, 1
      %s143 = scalar_select %p140, %s141, %s142
      %p146 = pneg %p140
      %p147 = scmp.eq.s32.totalorder %s13, 3
      %p148 = por %p146, %p147
      %p149 = scmp.ne.s32.totalorder %s141, %s144
      %p150 = scmp.eq.s32.totalorder %s13, 0
      %p151 = por %p149, %p150
      %p152 = scmp.ne.s32.totalorder %s141, %s144
      %p153 = scmp.eq.s32.totalorder %s18, 3
      %p154 = por %p152, %p153
      %p155 = scmp.ne.s32.totalorder %s144, %s145
      %p156 = scmp.eq.s32.totalorder %s18, 0
      %p157 = por %p155, %p156
      %p158 = scmp.ne.s32.totalorder %s144, %s145
      %p159 = scmp.eq.s32.totalorder %s19, 3
      %p160 = por %p158, %p159
      %p162 = scmp.ne.s32.totalorder %s145, %s161
      %p163 = scmp.eq.s32.totalorder %s19, 0
      %p164 = por %p162, %p163
      %p165 = scmp.le.s32.totalorder 1, %s13
      %p166 = scmp.lt.s32.totalorder %s13, 5
      %p167 = pnand %p165, %p166
      %p168 = pneg %p167
      // Predicated region
      $region9: #{tpu_custom_call.1} parent=5 // pred_check
        _
      $region10: #{tpu_custom_call.1} parent=5 // pred_check_branch
        %170 = sbr.rel (%p167) target = $region12
      $region11: #{tpu_custom_call.1} parent=5 // pred_region
        %s171 = ssub.s32 %s13, 1
      $region12: #{tpu_custom_call.1} parent=5 // pred_fallthru
        _
      %p172 = scmp.lt.s32.totalorder %s13, 4
      // Predicated region
      $region13: #{tpu_custom_call.1} parent=5 // pred_check
        %p173 = pneg %p172
      $region14: #{tpu_custom_call.1} parent=5 // pred_check_branch
        %175 = sbr.rel (%p173) target = $region16
      $region15: #{tpu_custom_call.1} parent=5 // pred_region
        // Predicated region
        $region17: #{tpu_custom_call.1} parent=15 // pred_check
          %p176 = pneg %p45
        $region18: #{tpu_custom_call.1} parent=15 // pred_check_branch
          %178 = sbr.rel (%p176) target = $region20
        $region19: #{tpu_custom_call.1} parent=15 // pred_region
          %s179 = smul.u32 16, %s20
          %p180 = scmp.lt.s32.totalorder %s179, 31
          %s181 = scalar_select %p180, %s179, 31
          %s182 = smul.addr %s181, 8
          %s183 = scalar_lea.vmem %s0, %s182
          %s184 = smul.u32 16, %s20
        $region20: #{tpu_custom_call.1} parent=15 // pred_fallthru
          _
        // Predicated region
        $region21: #{tpu_custom_call.1} parent=15 // pred_check
          %p185 = pneg %p71
        $region22: #{tpu_custom_call.1} parent=15 // pred_check_branch
          %187 = sbr.rel (%p185) target = $region24
        $region23: #{tpu_custom_call.1} parent=15 // pred_region
          %s188 = smul.u32 16, %s21
          %p189 = scmp.lt.s32.totalorder %s188, 31
          %s190 = scalar_select %p189, %s188, 31
          %s191 = smul.addr %s190, 8
          %s192 = scalar_lea.vmem %s1, %s191
          %s193 = smul.u32 16, %s21
        $region24: #{tpu_custom_call.1} parent=15 // pred_fallthru
          _
        // Predicated region
        $region25: #{tpu_custom_call.1} parent=15 // pred_check
          %p194 = pneg %p97
        $region26: #{tpu_custom_call.1} parent=15 // pred_check_branch
          %196 = sbr.rel (%p194) target = $region28
        $region27: #{tpu_custom_call.1} parent=15 // pred_region
          %s197 = smul.u32 16, %s20
          %p198 = scmp.lt.s32.totalorder %s197, 31
          %s199 = scalar_select %p198, %s197, 31
          %s200 = smul.addr %s199, 8
          %s201 = scalar_lea.vmem %s2, %s200
          %s202 = smul.u32 16, %s20
        $region28: #{tpu_custom_call.1} parent=15 // pred_fallthru
          _
        // Predicated region
        $region29: #{tpu_custom_call.1} parent=15 // pred_check
          %p203 = pneg %p123
        $region30: #{tpu_custom_call.1} parent=15 // pred_check_branch
          %205 = sbr.rel (%p203) target = $region32
        $region31: #{tpu_custom_call.1} parent=15 // pred_region
          %p206 = scmp.lt.s32.totalorder %s21, 1
          %s207 = scalar_select %p206, %s21, 1
          %s208 = scalar_lea.vmem %s3, %s207
        $region32: #{tpu_custom_call.1} parent=15 // pred_fallthru
          _
      $region16: #{tpu_custom_call.1} parent=5 // pred_fallthru
        _
      %p209 = scmp.le.s32.totalorder 1, %s13
      %p210 = scmp.lt.s32.totalorder %s13, 5
      %p211 = pnand %p209, %p210
      %p212 = pneg %p211
      // Predicated region
      $region33: #{tpu_custom_call.1} parent=5 // pred_check
        _
      $region34: #{tpu_custom_call.1} parent=5 // pred_check_branch
        %214 = sbr.rel (%p211) target = $region36
      $region35: #{tpu_custom_call.1} parent=5 // pred_region
        %s215 = ssub.s32 %s13, 1
        %s216 = smul.u32 16, %s22
        %p217 = scmp.lt.s32.totalorder %s216, 31
        %s218 = scalar_select %p217, %s216, 31
        %s219 = smul.addr %s218, 8
        %s220 = scalar_lea.vmem %s0, %s219
        %p221 = pneg %p51
        %p222 = pneg %p48
        %s223 = smul.u32 16, %s23
        %p224 = scmp.lt.s32.totalorder %s223, 31
        %s225 = scalar_select %p224, %s223, 31
        %s226 = smul.addr %s225, 8
        %s227 = scalar_lea.vmem %s1, %s226
        %p228 = pneg %p77
        %p229 = pneg %p74
        %s230 = smul.u32 16, %s22
        %p231 = scmp.lt.s32.totalorder %s230, 31
        %s232 = scalar_select %p231, %s230, 31
        %s233 = smul.addr %s232, 8
        %s234 = scalar_lea.vmem %s2, %s233
        %p235 = pneg %p103
        %p236 = pneg %p100
        %p237 = scmp.lt.s32.totalorder %s23, 1
        %s238 = scalar_select %p237, %s23, 1
        %s239 = scalar_lea.vmem %s3, %s238
        %p240 = pneg %p129
        %p241 = pneg %p126
        %p242 = pneg %p157
        %p243 = pneg %p154
        %s244 = sand.u32 %s144, 1
        %s245 = scalar_lea.sflag [#allocation3], %s244
        %s246 = sand.u32 %s144, 1
        %s247 = smul.addr %s246, 128
        %s248 = scalar_lea.vmem [#allocation2], %s247
        %s249 = smul.u32 16, %s22
        %p250 = scmp.lt.s32.totalorder %s249, 31
        %s251 = scalar_select %p250, %s249, 31
        %s252 = smul.addr %s251, 8
        %s253 = scalar_lea.vmem %s0, %s252
        %s254 = smul.u32 16, %s22
        %s255 = smul.u32 16, %s23
        %p256 = scmp.lt.s32.totalorder %s255, 31
        %s257 = scalar_select %p256, %s255, 31
        %s258 = smul.addr %s257, 8
        %s259 = scalar_lea.vmem %s1, %s258
        %s260 = smul.u32 16, %s23
        %s261 = smul.u32 16, %s22
        %p262 = scmp.lt.s32.totalorder %s261, 31
        %s263 = scalar_select %p262, %s261, 31
        %s264 = smul.addr %s263, 8
        %s265 = scalar_lea.vmem %s2, %s264
        %s266 = smul.u32 16, %s22
        %p267 = scmp.lt.s32.totalorder %s23, 1
        %s268 = scalar_select %p267, %s23, 1
        %s269 = scalar_lea.vmem %s3, %s268
        %s270 = smul.u32 16, %s22
        %v271 = vld [vmem:[%s253] sm:$0xff]
        %v272 = vld [vmem:[%s253 + $0x8] sm:$0xff]
        %v273 = vld [vmem:[%s253 + $0x10] sm:$0xff]
        %v274 = vld [vmem:[%s253 + $0x18] sm:$0xff]
        %v275 = vld [vmem:[%s253 + $0x20] sm:$0xff]
        %v276 = vld [vmem:[%s253 + $0x28] sm:$0xff]
        %v277 = vld [vmem:[%s253 + $0x30] sm:$0xff]
        %v278 = vld [vmem:[%s253 + $0x38] sm:$0xff]
        %v279 = vld [vmem:[%s253 + $0x40] sm:$0xff]
        %v280 = vld [vmem:[%s253 + $0x48] sm:$0xff]
        %v281 = vld [vmem:[%s253 + $0x50] sm:$0xff]
        %v282 = vld [vmem:[%s253 + $0x58] sm:$0xff]
        %v283 = vld [vmem:[%s253 + $0x60] sm:$0xff]
        %v284 = vld [vmem:[%s253 + $0x68] sm:$0xff]
        %v285 = vld [vmem:[%s253 + $0x70] sm:$0xff]
        %v286 = vld [vmem:[%s253 + $0x78] sm:$0xff]
        %v287 = vld [vmem:[%s259] sm:$0xff]
        %v288 = vld [vmem:[%s259 + $0x8] sm:$0xff]
        %v289 = vld [vmem:[%s259 + $0x10] sm:$0xff]
        %v290 = vld [vmem:[%s259 + $0x18] sm:$0xff]
        %v291 = vld [vmem:[%s259 + $0x20] sm:$0xff]
        %v292 = vld [vmem:[%s259 + $0x28] sm:$0xff]
        %v293 = vld [vmem:[%s259 + $0x30] sm:$0xff]
        %v294 = vld [vmem:[%s259 + $0x38] sm:$0xff]
        %v295 = vld [vmem:[%s259 + $0x40] sm:$0xff]
        %v296 = vld [vmem:[%s259 + $0x48] sm:$0xff]
        %v297 = vld [vmem:[%s259 + $0x50] sm:$0xff]
        %v298 = vld [vmem:[%s259 + $0x58] sm:$0xff]
        %v299 = vld [vmem:[%s259 + $0x60] sm:$0xff]
        %v300 = vld [vmem:[%s259 + $0x68] sm:$0xff]
        %v301 = vld [vmem:[%s259 + $0x70] sm:$0xff]
        %v302 = vld [vmem:[%s259 + $0x78] sm:$0xff]
        %vm303 = vcmask 261120
        %v305 = vsel %vm303, %v271, 0
        %v308 = vsel %vm303, %v272, 0
        %v311 = vsel %vm303, %v273, 0
        %v314 = vsel %vm303, %v274, 0
        %v317 = vsel %vm303, %v275, 0
        %v320 = vsel %vm303, %v276, 0
        %v323 = vsel %vm303, %v277, 0
        %v326 = vsel %vm303, %v278, 0
        %v329 = vsel %vm303, %v279, 0
        %v332 = vsel %vm303, %v280, 0
        %v335 = vsel %vm303, %v281, 0
        %v338 = vsel %vm303, %v282, 0
        %v341 = vsel %vm303, %v283, 0
        %v344 = vsel %vm303, %v284, 0
        %v347 = vsel %vm303, %v285, 0
        %v350 = vsel %vm303, %v286, 0
        %v353 = vsel %vm303, %v287, 0
        %v356 = vsel %vm303, %v288, 0
        %v359 = vsel %vm303, %v289, 0
        %v362 = vsel %vm303, %v290, 0
        %v365 = vsel %vm303, %v291, 0
        %v368 = vsel %vm303, %v292, 0
        %v371 = vsel %vm303, %v293, 0
        %v374 = vsel %vm303, %v294, 0
        %v377 = vsel %vm303, %v295, 0
        %v380 = vsel %vm303, %v296, 0
        %v383 = vsel %vm303, %v297, 0
        %v386 = vsel %vm303, %v298, 0
        %v389 = vsel %vm303, %v299, 0
        %v392 = vsel %vm303, %v300, 0
        %v395 = vsel %vm303, %v301, 0
        %v398 = vsel %vm303, %v302, 0
        %400 = vmatprep.subr.mxu0 0.0
        %401 = vmatpush1.xpose.msra.mxu0 %v353
        %402 = vmatprep.subr.mxu0 0.0
        %403 = vmatpush1.xpose.msra.mxu0 %v356
        %404 = vmatprep.subr.mxu0 0.0
        %405 = vmatpush1.xpose.msra.mxu0 %v359
        %406 = vmatprep.subr.mxu0 0.0
        %407 = vmatpush1.xpose.msra.mxu0 %v362
        %408 = vmatprep.subr.mxu0 0.0
        %409 = vmatpush1.xpose.msra.mxu0 %v365
        %410 = vmatprep.subr.mxu0 0.0
        %411 = vmatpush1.xpose.msra.mxu0 %v368
        %412 = vmatprep.subr.mxu0 0.0
        %413 = vmatpush1.xpose.msra.mxu0 %v371
        %414 = vmatprep.subr.mxu0 0.0
        %415 = vmatpush1.xpose.msra.mxu0 %v374
        %416 = vmatprep.subr.mxu0 0.0
        %417 = vmatpush1.xpose.msra.mxu0 %v377
        %418 = vmatprep.subr.mxu0 0.0
        %419 = vmatpush1.xpose.msra.mxu0 %v380
        %420 = vmatprep.subr.mxu0 0.0
        %421 = vmatpush1.xpose.msra.mxu0 %v383
        %422 = vmatprep.subr.mxu0 0.0
        %423 = vmatpush1.xpose.msra.mxu0 %v386
        %424 = vmatprep.subr.mxu0 0.0
        %425 = vmatpush1.xpose.msra.mxu0 %v389
        %426 = vmatprep.subr.mxu0 0.0
        %427 = vmatpush1.xpose.msra.mxu0 %v392
        %428 = vmatprep.subr.mxu0 0.0
        %429 = vmatpush1.xpose.msra.mxu0 %v395
        %430 = vmatprep.subr.mxu0 0.0
        %431 = vmatpush1.xpose.msra.mxu0 %v398
        %432 = vmatprep.subr.mxu0 0.0
        %433 = vmatpush1.xpose.msra.mxu0 0.0
        %434 = vmatprep.subr.mxu0 0.0
        %435 = vmatpush1.xpose.msra.mxu0 0.0
        %436 = vmatprep.subr.mxu0 0.0
        %437 = vmatpush1.xpose.msra.mxu0 0.0
        %438 = vmatprep.subr.mxu0 0.0
        %439 = vmatpush1.xpose.msra.mxu0 0.0
        %440 = vmatprep.subr.mxu0 0.0
        %441 = vmatpush1.xpose.msra.mxu0 0.0
        %442 = vmatprep.subr.mxu0 0.0
        %443 = vmatpush1.xpose.msra.mxu0 0.0
        %444 = vmatprep.subr.mxu0 0.0
        %445 = vmatpush1.xpose.msra.mxu0 0.0
        %446 = vmatprep.subr.mxu0 0.0
        %447 = vmatpush1.xpose.msra.mxu0 0.0
        %448 = vmatprep.subr.mxu0 0.0
        %449 = vmatpush1.xpose.msra.mxu0 0.0
        %450 = vmatprep.subr.mxu0 0.0
        %451 = vmatpush1.xpose.msra.mxu0 0.0
        %452 = vmatprep.subr.mxu0 0.0
        %453 = vmatpush1.xpose.msra.mxu0 0.0
        %454 = vmatprep.subr.mxu0 0.0
        %455 = vmatpush1.xpose.msra.mxu0 0.0
        %456 = vmatprep.subr.mxu0 0.0
        %457 = vmatpush1.xpose.msra.mxu0 0.0
        %458 = vmatprep.subr.mxu0 0.0
        %459 = vmatpush1.xpose.msra.mxu0 0.0
        %460 = vmatprep.subr.mxu0 0.0
        %461 = vmatpush1.xpose.msra.mxu0 0.0
        %462 = vmatprep.subr.mxu0 0.0
        %463 = vmatpush1.xpose.msra.mxu0 0.0
        %464 = vmatprep.mubr.f32.mxu0 0.0
        %465 = vmatmul.mubr.f32.gmra.mrb[0].mxu0 %v305
        %v466 = vpop.f32.mrb[0].mxu0
        %v467 = vadd.f32 0.0, %v466
        %v468 = vpop.f32.mrb[0].mxu0
        %469 = vmatprep.mubr.f32.mxu0 0.0
        %470 = vmatmul.mubr.f32.gmra.mrb[0].mxu0 %v308
        %v471 = vpop.f32.mrb[0].mxu0
        %v472 = vadd.f32 0.0, %v471
        %v473 = vpop.f32.mrb[0].mxu0
        %474 = vmatprep.mubr.f32.mxu0 0.0
        %475 = vmatmul.mubr.f32.gmra.mrb[0].mxu0 %v311
        %v476 = vpop.f32.mrb[0].mxu0
        %v477 = vadd.f32 0.0, %v476
        %v478 = vpop.f32.mrb[0].mxu0
        %479 = vmatprep.mubr.f32.mxu0 0.0
        %480 = vmatmul.mubr.f32.gmra.mrb[0].mxu0 %v314
        %v481 = vpop.f32.mrb[0].mxu0
        %v482 = vadd.f32 0.0, %v481
        %v483 = vpop.f32.mrb[0].mxu0
        %484 = vmatprep.mubr.f32.mxu0 0.0
        %485 = vmatmul.mubr.f32.gmra.mrb[0].mxu0 %v317
        %v486 = vpop.f32.mrb[0].mxu0
        %v487 = vadd.f32 0.0, %v486
        %v488 = vpop.f32.mrb[0].mxu0
        %489 = vmatprep.mubr.f32.mxu0 0.0
        %490 = vmatmul.mubr.f32.gmra.mrb[0].mxu0 %v320
        %v491 = vpop.f32.mrb[0].mxu0
        %v492 = vadd.f32 0.0, %v491
        %v493 = vpop.f32.mrb[0].mxu0
        %494 = vmatprep.mubr.f32.mxu0 0.0
        %495 = vmatmul.mubr.f32.gmra.mrb[0].mxu0 %v323
        %v496 = vpop.f32.mrb[0].mxu0
        %v497 = vadd.f32 0.0, %v496
        %v498 = vpop.f32.mrb[0].mxu0
        %499 = vmatprep.mubr.f32.mxu0 0.0
        %500 = vmatmul.mubr.f32.gmra.mrb[0].mxu0 %v326
        %v501 = vpop.f32.mrb[0].mxu0
        %v502 = vadd.f32 0.0, %v501
        %v503 = vpop.f32.mrb[0].mxu0
        %504 = vmatprep.mubr.f32.mxu0 0.0
        %505 = vmatmul.mubr.f32.gmra.mrb[0].mxu0 %v329
        %v506 = vpop.f32.mrb[0].mxu0
        %v507 = vadd.f32 0.0, %v506
        %v508 = vpop.f32.mrb[0].mxu0
        %509 = vmatprep.mubr.f32.mxu0 0.0
        %510 = vmatmul.mubr.f32.gmra.mrb[0].mxu0 %v332
        %v511 = vpop.f32.mrb[0].mxu0
        %v512 = vadd.f32 0.0, %v511
        %v513 = vpop.f32.mrb[0].mxu0
        %514 = vmatprep.mubr.f32.mxu0 0.0
        %515 = vmatmul.mubr.f32.gmra.mrb[0].mxu0 %v335
        %v516 = vpop.f32.mrb[0].mxu0
        %v517 = vadd.f32 0.0, %v516
        %v518 = vpop.f32.mrb[0].mxu0
        %519 = vmatprep.mubr.f32.mxu0 0.0
        %520 = vmatmul.mubr.f32.gmra.mrb[0].mxu0 %v338
        %v521 = vpop.f32.mrb[0].mxu0
        %v522 = vadd.f32 0.0, %v521
        %v523 = vpop.f32.mrb[0].mxu0
        %524 = vmatprep.mubr.f32.mxu0 0.0
        %525 = vmatmul.mubr.f32.gmra.mrb[0].mxu0 %v341
        %v526 = vpop.f32.mrb[0].mxu0
        %v527 = vadd.f32 0.0, %v526
        %v528 = vpop.f32.mrb[0].mxu0
        %529 = vmatprep.mubr.f32.mxu0 0.0
        %530 = vmatmul.mubr.f32.gmra.mrb[0].mxu0 %v344
        %v531 = vpop.f32.mrb[0].mxu0
        %v532 = vadd.f32 0.0, %v531
        %v533 = vpop.f32.mrb[0].mxu0
        %534 = vmatprep.mubr.f32.mxu0 0.0
        %535 = vmatmul.mubr.f32.gmra.mrb[0].mxu0 %v347
        %v536 = vpop.f32.mrb[0].mxu0
        %v537 = vadd.f32 0.0, %v536
        %v538 = vpop.f32.mrb[0].mxu0
        %539 = vmatprep.mubr.f32.mxu0 0.0
        %540 = vmatmul.mubr.f32.gmra.mrb[0].mxu0 %v350
        %v541 = vpop.f32.mrb[0].mxu0
        %v542 = vadd.f32 0.0, %v541
        %v543 = vpop.f32.mrb[0].mxu0
        %544 = vdwg.mxu0
        %v545 = vld [vmem:[%s265] sm:$0xff]
        %v546 = vld [vmem:[%s265 + $0x8] sm:$0xff]
        %v547 = vld [vmem:[%s265 + $0x10] sm:$0xff]
        %v548 = vld [vmem:[%s265 + $0x18] sm:$0xff]
        %v549 = vld [vmem:[%s265 + $0x20] sm:$0xff]
        %v550 = vld [vmem:[%s265 + $0x28] sm:$0xff]
        %v551 = vld [vmem:[%s265 + $0x30] sm:$0xff]
        %v552 = vld [vmem:[%s265 + $0x38] sm:$0xff]
        %v553 = vld [vmem:[%s265 + $0x40] sm:$0xff]
        %v554 = vld [vmem:[%s265 + $0x48] sm:$0xff]
        %v555 = vld [vmem:[%s265 + $0x50] sm:$0xff]
        %v556 = vld [vmem:[%s265 + $0x58] sm:$0xff]
        %v557 = vld [vmem:[%s265 + $0x60] sm:$0xff]
        %v558 = vld [vmem:[%s265 + $0x68] sm:$0xff]
        %v559 = vld [vmem:[%s265 + $0x70] sm:$0xff]
        %v560 = vld [vmem:[%s265 + $0x78] sm:$0xff]
        %v561 = vld [vmem:[%s269] sm:$0x1]
        %563 = vset.pattern.permute.xlu0 0
        %564 = vperm.xlu0 %563, %v545
        %v565 = vpop.permute.xlu0 %564
        %568 = vset.pattern.permute.xlu0 0
        %569 = vperm.xlu0 %568, %v546
        %v570 = vpop.permute.xlu0 %569
        %573 = vset.pattern.permute.xlu0 0
        %574 = vperm.xlu0 %573, %v547
        %v575 = vpop.permute.xlu0 %574
        %578 = vset.pattern.permute.xlu0 0
        %579 = vperm.xlu0 %578, %v548
        %v580 = vpop.permute.xlu0 %579
        %583 = vset.pattern.permute.xlu0 0
        %584 = vperm.xlu0 %583, %v549
        %v585 = vpop.permute.xlu0 %584
        %588 = vset.pattern.permute.xlu0 0
        %589 = vperm.xlu0 %588, %v550
        %v590 = vpop.permute.xlu0 %589
        %593 = vset.pattern.permute.xlu0 0
        %594 = vperm.xlu0 %593, %v551
        %v595 = vpop.permute.xlu0 %594
        %598 = vset.pattern.permute.xlu0 0
        %599 = vperm.xlu0 %598, %v552
        %v600 = vpop.permute.xlu0 %599
        %603 = vset.pattern.permute.xlu0 0
        %604 = vperm.xlu0 %603, %v553
        %v605 = vpop.permute.xlu0 %604
        %608 = vset.pattern.permute.xlu0 0
        %609 = vperm.xlu0 %608, %v554
        %v610 = vpop.permute.xlu0 %609
        %613 = vset.pattern.permute.xlu0 0
        %614 = vperm.xlu0 %613, %v555
        %v615 = vpop.permute.xlu0 %614
        %618 = vset.pattern.permute.xlu0 0
        %619 = vperm.xlu0 %618, %v556
        %v620 = vpop.permute.xlu0 %619
        %623 = vset.pattern.permute.xlu0 0
        %624 = vperm.xlu0 %623, %v557
        %v625 = vpop.permute.xlu0 %624
        %628 = vset.pattern.permute.xlu0 0
        %629 = vperm.xlu0 %628, %v558
        %v630 = vpop.permute.xlu0 %629
        %633 = vset.pattern.permute.xlu0 0
        %634 = vperm.xlu0 %633, %v559
        %v635 = vpop.permute.xlu0 %634
        %638 = vset.pattern.permute.xlu0 0
        %639 = vperm.xlu0 %638, %v560
        %v640 = vpop.permute.xlu0 %639
        %v643 = vlaneseq
        %v644 = vshrl.u32 %v643, 7
        %v645 = vsub.s32 0, %v644
        %v646 = vrot.slane %v561, %v645
        %v648 = vadd.f32 %v565, %v646
        %v649 = vadd.f32 %v570, %v646
        %v650 = vadd.f32 %v575, %v646
        %v651 = vadd.f32 %v580, %v646
        %v652 = vadd.f32 %v585, %v646
        %v653 = vadd.f32 %v590, %v646
        %v654 = vadd.f32 %v595, %v646
        %v655 = vadd.f32 %v600, %v646
        %v656 = vadd.f32 %v605, %v646
        %v657 = vadd.f32 %v610, %v646
        %v658 = vadd.f32 %v615, %v646
        %v659 = vadd.f32 %v620, %v646
        %v660 = vadd.f32 %v625, %v646
        %v661 = vadd.f32 %v630, %v646
        %v662 = vadd.f32 %v635, %v646
        %v663 = vadd.f32 %v640, %v646
        %v664 = vmul.f32 %v467, 2.0
        %v665 = vmul.f32 %v472, 2.0
        %v666 = vmul.f32 %v477, 2.0
        %v667 = vmul.f32 %v482, 2.0
        %v668 = vmul.f32 %v487, 2.0
        %v669 = vmul.f32 %v492, 2.0
        %v670 = vmul.f32 %v497, 2.0
        %v671 = vmul.f32 %v502, 2.0
        %v672 = vmul.f32 %v507, 2.0
        %v673 = vmul.f32 %v512, 2.0
        %v674 = vmul.f32 %v517, 2.0
        %v675 = vmul.f32 %v522, 2.0
        %v676 = vmul.f32 %v527, 2.0
        %v677 = vmul.f32 %v532, 2.0
        %v678 = vmul.f32 %v537, 2.0
        %v679 = vmul.f32 %v542, 2.0
        %v680 = vsub.f32 %v648, %v664
        %v681 = vsub.f32 %v649, %v665
        %v682 = vsub.f32 %v650, %v666
        %v683 = vsub.f32 %v651, %v667
        %v684 = vsub.f32 %v652, %v668
        %v685 = vsub.f32 %v653, %v669
        %v686 = vsub.f32 %v654, %v670
        %v687 = vsub.f32 %v655, %v671
        %v688 = vsub.f32 %v656, %v672
        %v689 = vsub.f32 %v657, %v673
        %v690 = vsub.f32 %v658, %v674
        %v691 = vsub.f32 %v659, %v675
        %v692 = vsub.f32 %v660, %v676
        %v693 = vsub.f32 %v661, %v677
        %v694 = vsub.f32 %v662, %v678
        %v695 = vsub.f32 %v663, %v679
        %696 = vst [vmem:[%s248] sm:$0xff] %v680
        %697 = vst [vmem:[%s248 + $0x8] sm:$0xff] %v681
        %698 = vst [vmem:[%s248 + $0x10] sm:$0xff] %v682
        %699 = vst [vmem:[%s248 + $0x18] sm:$0xff] %v683
        %700 = vst [vmem:[%s248 + $0x20] sm:$0xff] %v684
        %701 = vst [vmem:[%s248 + $0x28] sm:$0xff] %v685
        %702 = vst [vmem:[%s248 + $0x30] sm:$0xff] %v686
        %703 = vst [vmem:[%s248 + $0x38] sm:$0xff] %v687
        %704 = vst [vmem:[%s248 + $0x40] sm:$0xff] %v688
        %705 = vst [vmem:[%s248 + $0x48] sm:$0xff] %v689
        %706 = vst [vmem:[%s248 + $0x50] sm:$0xff] %v690
        %707 = vst [vmem:[%s248 + $0x58] sm:$0xff] %v691
        %708 = vst [vmem:[%s248 + $0x60] sm:$0xff] %v692
        %709 = vst [vmem:[%s248 + $0x68] sm:$0xff] %v693
        %710 = vst [vmem:[%s248 + $0x70] sm:$0xff] %v694
        %711 = vst [vmem:[%s248 + $0x78] sm:$0xff] %v695
        %s712 = sand.u32 %s144, 1
        %s713 = scalar_lea.sflag [#allocation3], %s712
        %s714 = sand.u32 %s144, 1
        %s715 = smul.addr %s714, 128
        %s716 = scalar_lea.vmem [#allocation2], %s715
        // Predicated region
        $region37: #{tpu_custom_call.1} parent=35 // pred_check
          %p717 = pneg %p154
        $region38: #{tpu_custom_call.1} parent=35 // pred_check_branch
          %719 = sbr.rel (%p717) target = $region40
        $region39: #{tpu_custom_call.1} parent=35 // pred_region
          %s720 = smul.u32 16, %s22
          %s722 = ssub.s32 2048, 2048
          %723 = vsyncadd %s713, %s722
          %s724 = smul.addr %s720, 2
          %s725 = sadd.s32 %s23, %s724
          %s726 = smul.addr %s725, 128
          %s727 = scalar_lea.hbm %s4, %s726
          %s728 = sshll.u32 %s716, 4
          %s729 = int_to_ptr.vmem [resolvable:$true] %s728
          %734 = dma.vmem_to_hbm [thread:$0]  %s729, 2048, %s727, %s713, 128, 256, 8
        $region40: #{tpu_custom_call.1} parent=35 // pred_fallthru
          _
      $region36: #{tpu_custom_call.1} parent=5 // pred_fallthru
        _
      %p735 = scmp.le.s32.totalorder 2, %s13
      // Predicated region
      $region41: #{tpu_custom_call.1} parent=5 // pred_check
        %p736 = pneg %p735
      $region42: #{tpu_custom_call.1} parent=5 // pred_check_branch
        %738 = sbr.rel (%p736) target = $region44
      $region43: #{tpu_custom_call.1} parent=5 // pred_region
        %s739 = ssub.s32 %s13, 2
        // Predicated region
        $region45: #{tpu_custom_call.1} parent=43 // pred_check
          %p740 = pneg %p160
        $region46: #{tpu_custom_call.1} parent=43 // pred_check_branch
          %742 = sbr.rel (%p740) target = $region48
        $region47: #{tpu_custom_call.1} parent=43 // pred_region
          %s743 = sand.u32 %s145, 1
          %s744 = scalar_lea.sflag [#allocation3], %s743
          %s745 = sand.u32 %s145, 1
          %s746 = smul.addr %s745, 128
          %s747 = scalar_lea.vmem [#allocation2], %s746
          %748 = dma.done %s744, 2048
        $region48: #{tpu_custom_call.1} parent=43 // pred_fallthru
          _
      $region44: #{tpu_custom_call.1} parent=5 // pred_fallthru
        _
    $region6: #{tpu_custom_call.1} parent=1 // loop_footer
      %s17 = sadd.s32 1, %s13
    $region7: #{tpu_custom_call.1} parent=1 // loop_footer_branch
      %12 = sbr.rel target = $region3
    $region8: #{tpu_custom_call.1} parent=1 // loop_exit
      _
    %749 = vsyncpa [#allocation3], 1
    %s750 = scalar_lea.sflag [#allocation3], 1
    %751 = vsyncpa %s750, 1

</llo_original>
